<compile_context>
chip_gen: v5e
topology: v5e:2x2
jax: 0.10.0
libtpu: 0.0.40
codegen_flags: <defaults>
</compile_context>

<pallas_src>
from functools import lru_cache

import numpy as np
import jax
import jax.numpy as jnp
from jax.experimental import pallas as pl
from jax.experimental.pallas import tpu as pltpu

_LANES = 128


def _round_up(x, m):
    return ((x + m - 1) // m) * m


@lru_cache(maxsize=None)
def _selection_constants(F, D):
    """Constant bf16 selection matrices for the fused triu inner product.

    GIJ : (F*D, 2*PD_pad)  lane-interleaved [GI_c | GJ_c] per 128-lane pair
          chunk c, so  x @ GIJ[:, chunk c]  yields (xi_c | xj_c) in one matmul.
    R   : (PD_pad, P_pad)  0/1 segment-sum matrix (pair-lane -> pair).
    """
    P = F * (F - 1) // 2
    PD = P * D
    n_chunks = _round_up(PD, _LANES) // _LANES
    PD_pad = n_chunks * _LANES
    P_pad = _round_up(P, _LANES)

    rows, cols = np.triu_indices(F, k=1)                # torch.masked_select order
    d = np.arange(D)
    src_i = (rows[:, None] * D + d[None, :]).reshape(-1)          # (PD,)
    src_j = (cols[:, None] * D + d[None, :]).reshape(-1)          # (PD,)
    lane = np.arange(F * D)

    gi = (lane[:, None] == src_i[None, :]).astype(np.float32)     # (FD, PD)
    gj = (lane[:, None] == src_j[None, :]).astype(np.float32)     # (FD, PD)
    gi = np.pad(gi, ((0, 0), (0, PD_pad - PD)))
    gj = np.pad(gj, ((0, 0), (0, PD_pad - PD)))

    gij = np.zeros((F * D, 2 * PD_pad), np.float32)
    for c in range(n_chunks):
        gij[:, 2 * c * _LANES:(2 * c + 1) * _LANES] = gi[:, c * _LANES:(c + 1) * _LANES]
        gij[:, (2 * c + 1) * _LANES:(2 * c + 2) * _LANES] = gj[:, c * _LANES:(c + 1) * _LANES]

    seg = np.repeat(np.arange(P), D)                               # (PD,)
    r = (seg[:, None] == np.arange(P)[None, :]).astype(np.float32)
    r = np.pad(r, ((0, PD_pad - PD), (0, P_pad - P)))              # (PD_pad, P_pad)

    return (jnp.asarray(gij, dtype=jnp.bfloat16),
            jnp.asarray(r, dtype=jnp.bfloat16),
            n_chunks, PD_pad, P_pad)


def _make_kernel(n_chunks, p_pad):
    def kernel(x_ref, gij_ref, r_ref, o_ref):
        # MXU is native bf16 on v5e/v6e/v7x; accumulate in f32.
        x = x_ref[...].astype(jnp.bfloat16)                        # (tb, F*D)
        tb = x.shape[0]
        acc = jnp.zeros((tb, p_pad), jnp.float32)
        # Short static (unrolled) loop over 128-lane pair chunks keeps the
        # intermediates small (no (tb, P*D) f32 spills to VMEM).
        for c in range(n_chunks):
            blk = gij_ref[:, 2 * c * _LANES:(2 * c + 2) * _LANES]             # (FD, 256)
            xij = jnp.dot(x, blk, preferred_element_type=jnp.float32)         # (tb, 256)
            prod = (xij[:, :_LANES] * xij[:, _LANES:]).astype(jnp.bfloat16)   # (tb, 128)
            acc = acc + jnp.dot(prod, r_ref[c * _LANES:(c + 1) * _LANES, :],
                                preferred_element_type=jnp.float32)           # (tb, P_pad)
        o_ref[...] = acc.astype(o_ref.dtype)
    return kernel


def inner_product_triu(feature_emb, *, tb_max=256, target_steps=8):
    """triu(x @ x^T, k=1) values for feature_emb (B, F, D) -> (B, F*(F-1)/2)."""
    B, F, D = feature_emb.shape
    P = F * (F - 1) // 2
    FD = F * D
    dtype = feature_emb.dtype

    gij, r, n_chunks, pd_pad, p_pad = _selection_constants(F, D)

    # Free, row-major reshape: every x load is fully lane-dense.
    # (If the caller can supply bf16 embeddings, pass them directly — the
    #  kernel casts internally — halving the HBM read on v6e/v7x.)
    xf = feature_emb.reshape(B, FD)

    # Tiny sublane-alignment pad only (< 8 rows); NOT a pad to a multiple of tb.
    Bp = _round_up(B, 8)
    if Bp != B:
        xf = jnp.pad(xf, ((0, Bp - B), (0, 0)))

    # Batch tile from a target grid-step count so the pipeline overlaps DMA
    # with compute and v7x megacore gets >= 2-4 steps per core.
    tb = _round_up(max(1, pl.cdiv(Bp, target_steps)), 8)
    tb = max(8, min(tb, tb_max))
    grid = (pl.cdiv(Bp, tb),)

    # TODO(synk): for large F*D configs, gate tb and the selection-matrix sizes
    # on pltpu.get_tpu_info().vmem_capacity_bytes (v7x has only 64 MiB), set
    # vmem_limit_bytes, mark GIJ/R with pipeline_mode=pl.Buffered(1), and
    # consider the batch-on-lanes VPU formulation instead of one-hot matmuls.

    itemsize = jnp.dtype(dtype).itemsize
    flops_per_row = 2 * (FD * 2 * pd_pad + pd_pad * p_pad)
    cost = pl.CostEstimate(
        flops=int(Bp * flops_per_row),
        transcendentals=0,
        bytes_accessed=int(Bp * (FD + p_pad) * itemsize
                           + (FD * 2 * pd_pad + pd_pad * p_pad) * 2),
    )

    out = pl.pallas_call(
        _make_kernel(n_chunks, p_pad),
        out_shape=jax.ShapeDtypeStruct((Bp, p_pad), dtype),
        grid_spec=pltpu.PrefetchScalarGridSpec(
            num_scalar_prefetch=0,
            grid=grid,
            in_specs=[
                pl.BlockSpec((tb, FD), lambda b: (b, 0)),            # x batch tile
                pl.BlockSpec((FD, 2 * pd_pad), lambda b: (0, 0)),    # GIJ (resident)
                pl.BlockSpec((pd_pad, p_pad), lambda b: (0, 0)),     # R   (resident)
            ],
            out_specs=pl.BlockSpec((tb, p_pad), lambda b: (b, 0)),   # lane-dense out
        ),
        compiler_params=pltpu.CompilerParams(
            dimension_semantics=("parallel",),
        ),
        cost_estimate=cost,
    )(xf, gij, r)

    # Drop the alignment rows and the zero-padded pair lanes.
    return out[:B, :P]


class InnerProductNetworkV2:
    """JAX/Pallas port of torchfm InnerProductNetworkV2 (forward only)."""

    def __init__(self, num_fields):
        self.num_fields = num_fields
        self.interaction_units = num_fields * (num_fields - 1) // 2

    def __call__(self, feature_emb):
        # feature_emb: (B, F, D) -> (B, F*(F-1)/2), same value order as
        # torch.masked_select(bmm(x, x^T), triu_mask).view(-1, P).
        out = inner_product_triu(feature_emb)
        return out.reshape(-1, self.interaction_units)


if __name__ == "__main__":
    key = jax.random.PRNGKey(0)
    B, F, D = 2, 8, 16
    feature_emb = jax.random.normal(key, (B, F, D), dtype=jnp.float32)

    model = InnerProductNetworkV2(num_fields=F)
    out = jax.block_until_ready(model(feature_emb))

    # Reference in plain JAX (mirrors the PyTorch semantics).
    ref_ipm = jnp.einsum("bfd,bgd->bfg", feature_emb, feature_emb)
    rows, cols = jnp.triu_indices(F, k=1)
    ref = ref_ipm[:, rows, cols].reshape(-1, F * (F - 1) // 2)

    assert out.shape == (B, F * (F - 1) // 2), out.shape
    # bf16 MXU path: ~1e-2 relative deviation vs the f32 reference is expected.
    max_err = float(jnp.max(jnp.abs(out - ref)))
    assert jnp.allclose(out, ref, atol=1e-1, rtol=5e-2), max_err
    print("KERNEL_OK")
</pallas_src>

<mosaic_0001>
module attributes {stable_mosaic.version = 11 : i64} {
  func.func @kernel(%arg0: i32, %arg1: memref<8x128xf32, #tpu.memory_space<vmem>>, %arg2: memref<128x1024xbf16, #tpu.memory_space<vmem>>, %arg3: memref<512x128xbf16, #tpu.memory_space<vmem>>, %arg4: memref<8x128xf32, #tpu.memory_space<vmem>>) attributes {dimension_semantics = [#tpu.dimension_semantics<parallel>], iteration_bounds = array<i64: 1>, scalar_prefetch = 0 : i64, scratch_operands = 0 : i64, tpu.core_type = #tpu.core_type<tc>, window_params = [{transform_indices = @transform_0, window_bounds = array<i64: 8, 128>}, {pipeline_mode = #tpu.pipeline_mode<synchronous>, transform_indices = @transform_1, window_bounds = array<i64: 128, 1024>}, {pipeline_mode = #tpu.pipeline_mode<synchronous>, transform_indices = @transform_2, window_bounds = array<i64: 512, 128>}, {transform_indices = @transform_3, window_bounds = array<i64: 8, 128>}]} {
    %c0 = arith.constant 0 : index
    %c0_0 = arith.constant 0 : index
    %0 = vector.load %arg1[%c0, %c0_0] : memref<8x128xf32, #tpu.memory_space<vmem>>, vector<8x128xf32>
    %1 = arith.truncf %0 : vector<8x128xf32> to vector<8x128xbf16>
    %cst = arith.constant 0.000000e+00 : f32
    %2 = vector.broadcast %cst : f32 to vector<8x128xf32>
    %c0_1 = arith.constant 0 : index
    %c0_2 = arith.constant 0 : index
    %3 = vector.load %arg2[%c0_1, %c0_2] : memref<128x1024xbf16, #tpu.memory_space<vmem>>, vector<128x256xbf16>
    %cst_3 = arith.constant dense<0.000000e+00> : vector<8x256xf32>
    %4 = tpu.matmul %1, %3, %cst_3 {dimension_numbers = #tpu.dot_dimension_numbers<[1], [0], [0], [1], [0, 0, 1, 1], [], []>} : vector<8x128xbf16>, vector<128x256xbf16>, vector<8x256xf32> -> vector<8x256xf32>
    %5 = vector.extract_strided_slice %4 {offsets = [0, 0], sizes = [8, 128], strides = [1, 1]} : vector<8x256xf32> to vector<8x128xf32>
    %6 = vector.extract_strided_slice %4 {offsets = [0, 128], sizes = [8, 128], strides = [1, 1]} : vector<8x256xf32> to vector<8x128xf32>
    %7 = arith.mulf %5, %6 : vector<8x128xf32>
    %8 = arith.truncf %7 : vector<8x128xf32> to vector<8x128xbf16>
    %c0_4 = arith.constant 0 : index
    %c0_5 = arith.constant 0 : index
    %9 = vector.load %arg3[%c0_4, %c0_5] : memref<512x128xbf16, #tpu.memory_space<vmem>>, vector<128x128xbf16>
    %cst_6 = arith.constant dense<0.000000e+00> : vector<8x128xf32>
    %10 = tpu.matmul %8, %9, %cst_6 {dimension_numbers = #tpu.dot_dimension_numbers<[1], [0], [0], [1], [0, 0, 1, 1], [], []>} : vector<8x128xbf16>, vector<128x128xbf16>, vector<8x128xf32> -> vector<8x128xf32>
    %11 = arith.addf %2, %10 : vector<8x128xf32>
    %c0_7 = arith.constant 0 : index
    %c256 = arith.constant 256 : index
    %12 = vector.load %arg2[%c0_7, %c256] : memref<128x1024xbf16, #tpu.memory_space<vmem>>, vector<128x256xbf16>
    %cst_8 = arith.constant dense<0.000000e+00> : vector<8x256xf32>
    %13 = tpu.matmul %1, %12, %cst_8 {dimension_numbers = #tpu.dot_dimension_numbers<[1], [0], [0], [1], [0, 0, 1, 1], [], []>} : vector<8x128xbf16>, vector<128x256xbf16>, vector<8x256xf32> -> vector<8x256xf32>
    %14 = vector.extract_strided_slice %13 {offsets = [0, 0], sizes = [8, 128], strides = [1, 1]} : vector<8x256xf32> to vector<8x128xf32>
    %15 = vector.extract_strided_slice %13 {offsets = [0, 128], sizes = [8, 128], strides = [1, 1]} : vector<8x256xf32> to vector<8x128xf32>
    %16 = arith.mulf %14, %15 : vector<8x128xf32>
    %17 = arith.truncf %16 : vector<8x128xf32> to vector<8x128xbf16>
    %c128 = arith.constant 128 : index
    %c0_9 = arith.constant 0 : index
    %18 = vector.load %arg3[%c128, %c0_9] : memref<512x128xbf16, #tpu.memory_space<vmem>>, vector<128x128xbf16>
    %cst_10 = arith.constant dense<0.000000e+00> : vector<8x128xf32>
    %19 = tpu.matmul %17, %18, %cst_10 {dimension_numbers = #tpu.dot_dimension_numbers<[1], [0], [0], [1], [0, 0, 1, 1], [], []>} : vector<8x128xbf16>, vector<128x128xbf16>, vector<8x128xf32> -> vector<8x128xf32>
    %20 = arith.addf %11, %19 : vector<8x128xf32>
    %c0_11 = arith.constant 0 : index
    %c512 = arith.constant 512 : index
    %21 = vector.load %arg2[%c0_11, %c512] : memref<128x1024xbf16, #tpu.memory_space<vmem>>, vector<128x256xbf16>
    %cst_12 = arith.constant dense<0.000000e+00> : vector<8x256xf32>
    %22 = tpu.matmul %1, %21, %cst_12 {dimension_numbers = #tpu.dot_dimension_numbers<[1], [0], [0], [1], [0, 0, 1, 1], [], []>} : vector<8x128xbf16>, vector<128x256xbf16>, vector<8x256xf32> -> vector<8x256xf32>
    %23 = vector.extract_strided_slice %22 {offsets = [0, 0], sizes = [8, 128], strides = [1, 1]} : vector<8x256xf32> to vector<8x128xf32>
    %24 = vector.extract_strided_slice %22 {offsets = [0, 128], sizes = [8, 128], strides = [1, 1]} : vector<8x256xf32> to vector<8x128xf32>
    %25 = arith.mulf %23, %24 : vector<8x128xf32>
    %26 = arith.truncf %25 : vector<8x128xf32> to vector<8x128xbf16>
    %c256_13 = arith.constant 256 : index
    %c0_14 = arith.constant 0 : index
    %27 = vector.load %arg3[%c256_13, %c0_14] : memref<512x128xbf16, #tpu.memory_space<vmem>>, vector<128x128xbf16>
    %cst_15 = arith.constant dense<0.000000e+00> : vector<8x128xf32>
    %28 = tpu.matmul %26, %27, %cst_15 {dimension_numbers = #tpu.dot_dimension_numbers<[1], [0], [0], [1], [0, 0, 1, 1], [], []>} : vector<8x128xbf16>, vector<128x128xbf16>, vector<8x128xf32> -> vector<8x128xf32>
    %29 = arith.addf %20, %28 : vector<8x128xf32>
    %c0_16 = arith.constant 0 : index
    %c768 = arith.constant 768 : index
    %30 = vector.load %arg2[%c0_16, %c768] : memref<128x1024xbf16, #tpu.memory_space<vmem>>, vector<128x256xbf16>
    %cst_17 = arith.constant dense<0.000000e+00> : vector<8x256xf32>
    %31 = tpu.matmul %1, %30, %cst_17 {dimension_numbers = #tpu.dot_dimension_numbers<[1], [0], [0], [1], [0, 0, 1, 1], [], []>} : vector<8x128xbf16>, vector<128x256xbf16>, vector<8x256xf32> -> vector<8x256xf32>
    %32 = vector.extract_strided_slice %31 {offsets = [0, 0], sizes = [8, 128], strides = [1, 1]} : vector<8x256xf32> to vector<8x128xf32>
    %33 = vector.extract_strided_slice %31 {offsets = [0, 128], sizes = [8, 128], strides = [1, 1]} : vector<8x256xf32> to vector<8x128xf32>
    %34 = arith.mulf %32, %33 : vector<8x128xf32>
    %35 = arith.truncf %34 : vector<8x128xf32> to vector<8x128xbf16>
    %c384 = arith.constant 384 : index
    %c0_18 = arith.constant 0 : index
    %36 = vector.load %arg3[%c384, %c0_18] : memref<512x128xbf16, #tpu.memory_space<vmem>>, vector<128x128xbf16>
    %cst_19 = arith.constant dense<0.000000e+00> : vector<8x128xf32>
    %37 = tpu.matmul %35, %36, %cst_19 {dimension_numbers = #tpu.dot_dimension_numbers<[1], [0], [0], [1], [0, 0, 1, 1], [], []>} : vector<8x128xbf16>, vector<128x128xbf16>, vector<8x128xf32> -> vector<8x128xf32>
    %38 = arith.addf %29, %37 : vector<8x128xf32>
    %c0_20 = arith.constant 0 : index
    %c0_21 = arith.constant 0 : index
    %39 = vector.load %arg4[%c0_20, %c0_21] : memref<8x128xf32, #tpu.memory_space<vmem>>, vector<8x128xf32>
    tpu.vector_store %arg4[%c0_20, %c0_21], %38 {strides = array<i32>} : memref<8x128xf32, #tpu.memory_space<vmem>>, vector<8x128xf32>,
    return
  }
  func.func @transform_0(%arg0: i32) -> (i32, i32) {
    %c0_i32 = arith.constant 0 : i32
    %c0_i32_0 = arith.constant 0 : i32
    return %arg0, %c0_i32 : i32, i32
  }
  func.func @transform_1(%arg0: i32) -> (i32, i32) {
    %c0_i32 = arith.constant 0 : i32
    %c0_i32_0 = arith.constant 0 : i32
    %c0_i32_1 = arith.constant 0 : i32
    return %c0_i32, %c0_i32_0 : i32, i32
  }
  func.func @transform_2(%arg0: i32) -> (i32, i32) {
    %c0_i32 = arith.constant 0 : i32
    %c0_i32_0 = arith.constant 0 : i32
    %c0_i32_1 = arith.constant 0 : i32
    return %c0_i32, %c0_i32_0 : i32, i32
  }
  func.func @transform_3(%arg0: i32) -> (i32, i32) {
    %c0_i32 = arith.constant 0 : i32
    %c0_i32_0 = arith.constant 0 : i32
    return %arg0, %c0_i32 : i32, i32
  }
}

</mosaic_0001>

<llo_original>
// kernel: tpu_custom_call.1
$region0: #{tpu_custom_call.1}
  #allocation0 [shape = 'u32[]', space=smem, size = 0x4, offset = 0x4, fixed_abs, tag = 'smem constant byte address 0x4 - core index']
  #allocation1 [shape = 'u32[72,128]{1,0:T(1,128)}', space=vmem, size = 0x9000, scoped, tag = 'internal scratch']
  %s0 = inlined_call_operand.hbm [shape: f32[8,128], index: 0, kind: input, shape index: {}]
  %s1 = inlined_call_operand.hbm [shape: bf16[128,1024], index: 1, kind: input, shape index: {}]
  %s2 = inlined_call_operand.hbm [shape: bf16[512,128], index: 2, kind: input, shape index: {}]
  %s3 = inlined_call_operand.hbm [shape: f32[8,128], index: 3, kind: output, shape index: {}]
  %s4 = sld [smem:[#allocation0]]
  $region34: #{tpu_custom_call.1} parent=0
    _
  %s6 = ssub.s32 1, %s4
  %s7 = scalar_select 0, %s6, %s4
  $region1: #{tpu_custom_call.1} parent=0
    #allocation2 [shape = 'u8[4096]{0}', space=vmem, size = 0x1000, scoped, tag = 'input window, operand 0, single buffered']
    #allocation3 [shape = 's32[1]{0}', space=sflag, size = 0x4, scoped, tag = 'scoped memory for tpu_custom_call.1']
    #allocation4 [shape = 's32[1]{0}', space=sflag, size = 0x4, scoped, tag = 'scoped memory for tpu_custom_call.1']
    #allocation5 [shape = 'u8[262144]{0}', space=vmem, size = 0x40000, scoped, tag = 'input window, operand 1, single buffered']
    #allocation6 [shape = 's32[1]{0}', space=sflag, size = 0x4, scoped, tag = 'scoped memory for tpu_custom_call.1']
    #allocation7 [shape = 'u8[131072]{0}', space=vmem, size = 0x20000, scoped, tag = 'input window, operand 2, single buffered']
    #allocation8 [shape = 'u8[4096]{0}', space=vmem, size = 0x1000, scoped, tag = 'output window, operand 0, single buffered']
    %8 = vsyncpa [#allocation3], 0
    %9 = vsyncpa [#allocation6], 0
    %10 = vsyncpa [#allocation4], 0
    // Predicated region
    $region2: #{tpu_custom_call.1} parent=1 // pred_check
      _
    $region3: #{tpu_custom_call.1} parent=1 // pred_check_branch
      %12 = sbr.rel (0) target = $region5
    $region4: #{tpu_custom_call.1} parent=1 // pred_region
      %14 = vsyncadd [#allocation3], 0
      %s16 = sshll.u32 %s0, 4
      %s17 = int_to_ptr.hbm [resolvable:$true] %s16
      %s18 = sshll.u32 [#allocation2], 4
      %s19 = int_to_ptr.vmem [resolvable:$true] %s18
      %21 = dma.hbm_to_vmem [thread:$0]  %s17, 128, %s19, [#allocation3]
    $region5: #{tpu_custom_call.1} parent=1 // pred_fallthru
      _
    // Predicated region
    $region6: #{tpu_custom_call.1} parent=1 // pred_check
      _
    $region7: #{tpu_custom_call.1} parent=1 // pred_check_branch
      %23 = sbr.rel (0) target = $region9
    $region8: #{tpu_custom_call.1} parent=1 // pred_region
      %25 = vsyncadd [#allocation6], 0
      %s26 = sshll.u32 %s1, 4
      %s27 = int_to_ptr.hbm [resolvable:$true] %s26
      %s28 = sshll.u32 [#allocation5], 4
      %s29 = int_to_ptr.vmem [resolvable:$true] %s28
      %34 = dma.hbm_to_vmem [thread:$0]  %s27, 8192, %s29, [#allocation6], 512, 512, 32
    $region9: #{tpu_custom_call.1} parent=1 // pred_fallthru
      _
    // Predicated region
    $region10: #{tpu_custom_call.1} parent=1 // pred_check
      _
    $region11: #{tpu_custom_call.1} parent=1 // pred_check_branch
      %36 = sbr.rel (0) target = $region13
    $region12: #{tpu_custom_call.1} parent=1 // pred_region
      %38 = vsyncadd [#allocation6], 0
      %s39 = sshll.u32 %s2, 4
      %s40 = int_to_ptr.hbm [resolvable:$true] %s39
      %s41 = sshll.u32 [#allocation7], 4
      %s42 = int_to_ptr.vmem [resolvable:$true] %s41
      %47 = dma.hbm_to_vmem [thread:$0]  %s40, 4096, %s42, [#allocation6], 64, 64, 4
    $region13: #{tpu_custom_call.1} parent=1 // pred_fallthru
      _
    // Predicated region
    $region14: #{tpu_custom_call.1} parent=1 // pred_check
      _
    $region15: #{tpu_custom_call.1} parent=1 // pred_check_branch
      %49 = sbr.rel (0) target = $region17
    $region16: #{tpu_custom_call.1} parent=1 // pred_region
      %51 = dma.done [#allocation3], 128
    $region17: #{tpu_custom_call.1} parent=1 // pred_fallthru
      _
    // Predicated region
    $region18: #{tpu_custom_call.1} parent=1 // pred_check
      _
    $region19: #{tpu_custom_call.1} parent=1 // pred_check_branch
      %53 = sbr.rel (0) target = $region21
    $region20: #{tpu_custom_call.1} parent=1 // pred_region
      %55 = dma.done [#allocation6], 8192
    $region21: #{tpu_custom_call.1} parent=1 // pred_fallthru
      _
    // Predicated region
    $region22: #{tpu_custom_call.1} parent=1 // pred_check
      _
    $region23: #{tpu_custom_call.1} parent=1 // pred_check_branch
      %57 = sbr.rel (0) target = $region25
    $region24: #{tpu_custom_call.1} parent=1 // pred_region
      %59 = dma.done [#allocation6], 4096
    $region25: #{tpu_custom_call.1} parent=1 // pred_fallthru
      _
    %v60 = vld [vmem:[#allocation2] sm:$0xff]
    %v61 = vpack.c.bf16 %v60, %v60
    %v62 = vld [vmem:[#allocation5] sm:$0xff]
    %v63 = vld [vmem:[#allocation5 + $0x20] sm:$0xff]
    %v64 = vld [vmem:[#allocation5 + $0x40] sm:$0xff]
    %v65 = vld [vmem:[#allocation5 + $0x60] sm:$0xff]
    %v66 = vld [vmem:[#allocation5 + $0x80] sm:$0xff]
    %v67 = vld [vmem:[#allocation5 + $0xa0] sm:$0xff]
    %v68 = vld [vmem:[#allocation5 + $0xc0] sm:$0xff]
    %v69 = vld [vmem:[#allocation5 + $0xe0] sm:$0xff]
    %v70 = vld [vmem:[#allocation5 + $0x100] sm:$0xff]
    %v71 = vld [vmem:[#allocation5 + $0x120] sm:$0xff]
    %v72 = vld [vmem:[#allocation5 + $0x140] sm:$0xff]
    %v73 = vld [vmem:[#allocation5 + $0x160] sm:$0xff]
    %v74 = vld [vmem:[#allocation5 + $0x180] sm:$0xff]
    %v75 = vld [vmem:[#allocation5 + $0x1a0] sm:$0xff]
    %v76 = vld [vmem:[#allocation5 + $0x1c0] sm:$0xff]
    %v77 = vld [vmem:[#allocation5 + $0x1e0] sm:$0xff]
    %v94 = vunpack.c.l.b16 %v62
    %v95 = vunpack.c.h.b16 %v62
    %v96 = vunpack.c.l.b16 %v63
    %v97 = vunpack.c.h.b16 %v63
    %v98 = vunpack.c.l.b16 %v64
    %v99 = vunpack.c.h.b16 %v64
    %v100 = vunpack.c.l.b16 %v65
    %v101 = vunpack.c.h.b16 %v65
    %v102 = vunpack.c.l.b16 %v66
    %v103 = vunpack.c.h.b16 %v66
    %v104 = vunpack.c.l.b16 %v67
    %v105 = vunpack.c.h.b16 %v67
    %v106 = vunpack.c.l.b16 %v68
    %v107 = vunpack.c.h.b16 %v68
    %v108 = vunpack.c.l.b16 %v69
    %v109 = vunpack.c.h.b16 %v69
    %v110 = vunpack.c.l.b16 %v70
    %v111 = vunpack.c.h.b16 %v70
    %v112 = vunpack.c.l.b16 %v71
    %v113 = vunpack.c.h.b16 %v71
    %v114 = vunpack.c.l.b16 %v72
    %v115 = vunpack.c.h.b16 %v72
    %v116 = vunpack.c.l.b16 %v73
    %v117 = vunpack.c.h.b16 %v73
    %v118 = vunpack.c.l.b16 %v74
    %v119 = vunpack.c.h.b16 %v74
    %v120 = vunpack.c.l.b16 %v75
    %v121 = vunpack.c.h.b16 %v75
    %v122 = vunpack.c.l.b16 %v76
    %v123 = vunpack.c.h.b16 %v76
    %v124 = vunpack.c.l.b16 %v77
    %v125 = vunpack.c.h.b16 %v77
    %v126 = vpack.c.b16 %v96, %v94
    %v127 = vpack.c.b16 %v97, %v95
    %v128 = vpack.c.b16 %v100, %v98
    %v129 = vpack.c.b16 %v101, %v99
    %v130 = vpack.c.b16 %v104, %v102
    %v131 = vpack.c.b16 %v105, %v103
    %v132 = vpack.c.b16 %v108, %v106
    %v133 = vpack.c.b16 %v109, %v107
    %v134 = vpack.c.b16 %v112, %v110
    %v135 = vpack.c.b16 %v113, %v111
    %v136 = vpack.c.b16 %v116, %v114
    %v137 = vpack.c.b16 %v117, %v115
    %v138 = vpack.c.b16 %v120, %v118
    %v139 = vpack.c.b16 %v121, %v119
    %v140 = vpack.c.b16 %v124, %v122
    %v141 = vpack.c.b16 %v125, %v123
    %158 = vmatpush.bf16.msra.mxu0 %v140
    %159 = vmatpush.bf16.msra.mxu0 %v138
    %160 = vmatpush.bf16.msra.mxu0 %v136
    %161 = vmatpush.bf16.msra.mxu0 %v134
    %162 = vmatpush.bf16.msra.mxu0 %v132
    %163 = vmatpush.bf16.msra.mxu0 %v130
    %164 = vmatpush.bf16.msra.mxu0 %v128
    %165 = vmatpush.bf16.msra.mxu0 %v126
    %166 = vmatmul.bf16.gmra.mxu0 %v61
    %v167 = vpop.f32.mrf.mxu0
    %v168 = vadd.f32 0.0, %v167
    %v169 = vpop.f32.mrf.mxu0
    %170 = vdwg.mxu0
    %171 = vmatpush.bf16.msra.mxu0 %v141
    %172 = vmatpush.bf16.msra.mxu0 %v139
    %173 = vmatpush.bf16.msra.mxu0 %v137
    %174 = vmatpush.bf16.msra.mxu0 %v135
    %175 = vmatpush.bf16.msra.mxu0 %v133
    %176 = vmatpush.bf16.msra.mxu0 %v131
    %177 = vmatpush.bf16.msra.mxu0 %v129
    %178 = vmatpush.bf16.msra.mxu0 %v127
    %179 = vmatmul.bf16.gmra.mxu0 %v61
    %v180 = vpop.f32.mrf.mxu0
    %v181 = vadd.f32 0.0, %v180
    %v182 = vpop.f32.mrf.mxu0
    %183 = vdwg.mxu0
    %v184 = vmul.f32 %v168, %v181
    %v185 = vpack.c.bf16 %v184, %v184
    %v186 = vld [vmem:[#allocation7] sm:$0xf]
    %v187 = vld [vmem:[#allocation7 + $0x4] sm:$0xf]
    %v188 = vld [vmem:[#allocation7 + $0x8] sm:$0xf]
    %v189 = vld [vmem:[#allocation7 + $0xc] sm:$0xf]
    %v190 = vld [vmem:[#allocation7 + $0x10] sm:$0xf]
    %v191 = vld [vmem:[#allocation7 + $0x14] sm:$0xf]
    %v192 = vld [vmem:[#allocation7 + $0x18] sm:$0xf]
    %v193 = vld [vmem:[#allocation7 + $0x1c] sm:$0xf]
    %v194 = vld [vmem:[#allocation7 + $0x20] sm:$0xf]
    %v195 = vld [vmem:[#allocation7 + $0x24] sm:$0xf]
    %v196 = vld [vmem:[#allocation7 + $0x28] sm:$0xf]
    %v197 = vld [vmem:[#allocation7 + $0x2c] sm:$0xf]
    %v198 = vld [vmem:[#allocation7 + $0x30] sm:$0xf]
    %v199 = vld [vmem:[#allocation7 + $0x34] sm:$0xf]
    %v200 = vld [vmem:[#allocation7 + $0x38] sm:$0xf]
    %v201 = vld [vmem:[#allocation7 + $0x3c] sm:$0xf]
    %v202 = vld [vmem:[#allocation5 + $0x8] sm:$0xff]
    %v203 = vld [vmem:[#allocation5 + $0x28] sm:$0xff]
    %v204 = vld [vmem:[#allocation5 + $0x48] sm:$0xff]
    %v205 = vld [vmem:[#allocation5 + $0x68] sm:$0xff]
    %v206 = vld [vmem:[#allocation5 + $0x88] sm:$0xff]
    %v207 = vld [vmem:[#allocation5 + $0xa8] sm:$0xff]
    %v208 = vld [vmem:[#allocation5 + $0xc8] sm:$0xff]
    %v209 = vld [vmem:[#allocation5 + $0xe8] sm:$0xff]
    %v210 = vld [vmem:[#allocation5 + $0x108] sm:$0xff]
    %v211 = vld [vmem:[#allocation5 + $0x128] sm:$0xff]
    %v212 = vld [vmem:[#allocation5 + $0x148] sm:$0xff]
    %v213 = vld [vmem:[#allocation5 + $0x168] sm:$0xff]
    %v214 = vld [vmem:[#allocation5 + $0x188] sm:$0xff]
    %v215 = vld [vmem:[#allocation5 + $0x1a8] sm:$0xff]
    %v216 = vld [vmem:[#allocation5 + $0x1c8] sm:$0xff]
    %v217 = vld [vmem:[#allocation5 + $0x1e8] sm:$0xff]
    %v234 = vunpack.c.l.b16 %v202
    %v235 = vunpack.c.h.b16 %v202
    %v236 = vunpack.c.l.b16 %v203
    %v237 = vunpack.c.h.b16 %v203
    %v238 = vunpack.c.l.b16 %v204
    %v239 = vunpack.c.h.b16 %v204
    %v240 = vunpack.c.l.b16 %v205
    %v241 = vunpack.c.h.b16 %v205
    %v242 = vunpack.c.l.b16 %v206
    %v243 = vunpack.c.h.b16 %v206
    %v244 = vunpack.c.l.b16 %v207
    %v245 = vunpack.c.h.b16 %v207
    %v246 = vunpack.c.l.b16 %v208
    %v247 = vunpack.c.h.b16 %v208
    %v248 = vunpack.c.l.b16 %v209
    %v249 = vunpack.c.h.b16 %v209
    %v250 = vunpack.c.l.b16 %v210
    %v251 = vunpack.c.h.b16 %v210
    %v252 = vunpack.c.l.b16 %v211
    %v253 = vunpack.c.h.b16 %v211
    %v254 = vunpack.c.l.b16 %v212
    %v255 = vunpack.c.h.b16 %v212
    %v256 = vunpack.c.l.b16 %v213
    %v257 = vunpack.c.h.b16 %v213
    %v258 = vunpack.c.l.b16 %v214
    %v259 = vunpack.c.h.b16 %v214
    %v260 = vunpack.c.l.b16 %v215
    %v261 = vunpack.c.h.b16 %v215
    %v262 = vunpack.c.l.b16 %v216
    %v263 = vunpack.c.h.b16 %v216
    %v264 = vunpack.c.l.b16 %v217
    %v265 = vunpack.c.h.b16 %v217
    %v266 = vpack.c.b16 %v236, %v234
    %v267 = vpack.c.b16 %v237, %v235
    %v268 = vpack.c.b16 %v240, %v238
    %v269 = vpack.c.b16 %v241, %v239
    %v270 = vpack.c.b16 %v244, %v242
    %v271 = vpack.c.b16 %v245, %v243
    %v272 = vpack.c.b16 %v248, %v246
    %v273 = vpack.c.b16 %v249, %v247
    %v274 = vpack.c.b16 %v252, %v250
    %v275 = vpack.c.b16 %v253, %v251
    %v276 = vpack.c.b16 %v256, %v254
    %v277 = vpack.c.b16 %v257, %v255
    %v278 = vpack.c.b16 %v260, %v258
    %v279 = vpack.c.b16 %v261, %v259
    %v280 = vpack.c.b16 %v264, %v262
    %v281 = vpack.c.b16 %v265, %v263
    %298 = vmatpush.bf16.msra.mxu0 %v280
    %299 = vmatpush.bf16.msra.mxu0 %v278
    %300 = vmatpush.bf16.msra.mxu0 %v276
    %301 = vmatpush.bf16.msra.mxu0 %v274
    %302 = vmatpush.bf16.msra.mxu0 %v272
    %303 = vmatpush.bf16.msra.mxu0 %v270
    %304 = vmatpush.bf16.msra.mxu0 %v268
    %305 = vmatpush.bf16.msra.mxu0 %v266
    %306 = vmatmul.bf16.gmra.mxu0 %v61
    %v307 = vpop.f32.mrf.mxu0
    %v308 = vadd.f32 0.0, %v307
    %v309 = vpop.f32.mrf.mxu0
    %310 = vdwg.mxu0
    %311 = vmatpush.bf16.msra.mxu0 %v281
    %312 = vmatpush.bf16.msra.mxu0 %v279
    %313 = vmatpush.bf16.msra.mxu0 %v277
    %314 = vmatpush.bf16.msra.mxu0 %v275
    %315 = vmatpush.bf16.msra.mxu0 %v273
    %316 = vmatpush.bf16.msra.mxu0 %v271
    %317 = vmatpush.bf16.msra.mxu0 %v269
    %318 = vmatpush.bf16.msra.mxu0 %v267
    %319 = vmatmul.bf16.gmra.mxu0 %v61
    %v320 = vpop.f32.mrf.mxu0
    %v321 = vadd.f32 0.0, %v320
    %v322 = vpop.f32.mrf.mxu0
    %323 = vdwg.mxu0
    %v324 = vmul.f32 %v308, %v321
    %v325 = vpack.c.bf16 %v324, %v324
    %v326 = vld [vmem:[#allocation7 + $0x40] sm:$0xf]
    %v327 = vld [vmem:[#allocation7 + $0x44] sm:$0xf]
    %v328 = vld [vmem:[#allocation7 + $0x48] sm:$0xf]
    %v329 = vld [vmem:[#allocation7 + $0x4c] sm:$0xf]
    %v330 = vld [vmem:[#allocation7 + $0x50] sm:$0xf]
    %v331 = vld [vmem:[#allocation7 + $0x54] sm:$0xf]
    %v332 = vld [vmem:[#allocation7 + $0x58] sm:$0xf]
    %v333 = vld [vmem:[#allocation7 + $0x5c] sm:$0xf]
    %v334 = vld [vmem:[#allocation7 + $0x60] sm:$0xf]
    %v335 = vld [vmem:[#allocation7 + $0x64] sm:$0xf]
    %v336 = vld [vmem:[#allocation7 + $0x68] sm:$0xf]
    %v337 = vld [vmem:[#allocation7 + $0x6c] sm:$0xf]
    %v338 = vld [vmem:[#allocation7 + $0x70] sm:$0xf]
    %v339 = vld [vmem:[#allocation7 + $0x74] sm:$0xf]
    %v340 = vld [vmem:[#allocation7 + $0x78] sm:$0xf]
    %v341 = vld [vmem:[#allocation7 + $0x7c] sm:$0xf]
    %v358 = vunpack.c.l.b16 %v326
    %v359 = vunpack.c.l.b16 %v327
    %v360 = vunpack.c.l.b16 %v328
    %v361 = vunpack.c.l.b16 %v329
    %v362 = vunpack.c.l.b16 %v330
    %v363 = vunpack.c.l.b16 %v331
    %v364 = vunpack.c.l.b16 %v332
    %v365 = vunpack.c.l.b16 %v333
    %v366 = vunpack.c.l.b16 %v334
    %v367 = vunpack.c.l.b16 %v335
    %v368 = vunpack.c.l.b16 %v336
    %v369 = vunpack.c.l.b16 %v337
    %v370 = vunpack.c.l.b16 %v338
    %v371 = vunpack.c.l.b16 %v339
    %v372 = vunpack.c.l.b16 %v340
    %v373 = vunpack.c.l.b16 %v341
    %v374 = vpack.c.b16 %v359, %v358
    %v375 = vpack.c.b16 %v361, %v360
    %v376 = vpack.c.b16 %v363, %v362
    %v377 = vpack.c.b16 %v365, %v364
    %v378 = vpack.c.b16 %v367, %v366
    %v379 = vpack.c.b16 %v369, %v368
    %v380 = vpack.c.b16 %v371, %v370
    %v381 = vpack.c.b16 %v373, %v372
    %390 = vmatpush.bf16.msra.mxu0 %v381
    %391 = vmatpush.bf16.msra.mxu0 %v380
    %392 = vmatpush.bf16.msra.mxu0 %v379
    %393 = vmatpush.bf16.msra.mxu0 %v378
    %394 = vmatpush.bf16.msra.mxu0 %v377
    %395 = vmatpush.bf16.msra.mxu0 %v376
    %396 = vmatpush.bf16.msra.mxu0 %v375
    %397 = vmatpush.bf16.msra.mxu0 %v374
    %398 = vmatmul.bf16.gmra.mxu0 %v325
    %v399 = vpop.f32.mrf.mxu0
    %v400 = vadd.f32 0.0, %v399
    %v401 = vpop.f32.mrf.mxu0
    %402 = vdwg.mxu0
    %v419 = vunpack.c.l.b16 %v186
    %v420 = vunpack.c.l.b16 %v187
    %v421 = vunpack.c.l.b16 %v188
    %v422 = vunpack.c.l.b16 %v189
    %v423 = vunpack.c.l.b16 %v190
    %v424 = vunpack.c.l.b16 %v191
    %v425 = vunpack.c.l.b16 %v192
    %v426 = vunpack.c.l.b16 %v193
    %v427 = vunpack.c.l.b16 %v194
    %v428 = vunpack.c.l.b16 %v195
    %v429 = vunpack.c.l.b16 %v196
    %v430 = vunpack.c.l.b16 %v197
    %v431 = vunpack.c.l.b16 %v198
    %v432 = vunpack.c.l.b16 %v199
    %v433 = vunpack.c.l.b16 %v200
    %v434 = vunpack.c.l.b16 %v201
    %v435 = vpack.c.b16 %v420, %v419
    %v436 = vpack.c.b16 %v422, %v421
    %v437 = vpack.c.b16 %v424, %v423
    %v438 = vpack.c.b16 %v426, %v425
    %v439 = vpack.c.b16 %v428, %v427
    %v440 = vpack.c.b16 %v430, %v429
    %v441 = vpack.c.b16 %v432, %v431
    %v442 = vpack.c.b16 %v434, %v433
    %451 = vmatpush.bf16.msra.mxu0 %v442
    %452 = vmatpush.bf16.msra.mxu0 %v441
    %453 = vmatpush.bf16.msra.mxu0 %v440
    %454 = vmatpush.bf16.msra.mxu0 %v439
    %455 = vmatpush.bf16.msra.mxu0 %v438
    %456 = vmatpush.bf16.msra.mxu0 %v437
    %457 = vmatpush.bf16.msra.mxu0 %v436
    %458 = vmatpush.bf16.msra.mxu0 %v435
    %459 = vmatmul.bf16.gmra.mxu0 %v185
    %v460 = vpop.f32.mrf.mxu0
    %v461 = vadd.f32 %v400, %v460
    %v462 = vpop.f32.mrf.mxu0
    %463 = vdwg.mxu0
    %v464 = vld [vmem:[#allocation5 + $0x10] sm:$0xff]
    %v465 = vld [vmem:[#allocation5 + $0x30] sm:$0xff]
    %v466 = vld [vmem:[#allocation5 + $0x50] sm:$0xff]
    %v467 = vld [vmem:[#allocation5 + $0x70] sm:$0xff]
    %v468 = vld [vmem:[#allocation5 + $0x90] sm:$0xff]
    %v469 = vld [vmem:[#allocation5 + $0xb0] sm:$0xff]
    %v470 = vld [vmem:[#allocation5 + $0xd0] sm:$0xff]
    %v471 = vld [vmem:[#allocation5 + $0xf0] sm:$0xff]
    %v472 = vld [vmem:[#allocation5 + $0x110] sm:$0xff]
    %v473 = vld [vmem:[#allocation5 + $0x130] sm:$0xff]
    %v474 = vld [vmem:[#allocation5 + $0x150] sm:$0xff]
    %v475 = vld [vmem:[#allocation5 + $0x170] sm:$0xff]
    %v476 = vld [vmem:[#allocation5 + $0x190] sm:$0xff]
    %v477 = vld [vmem:[#allocation5 + $0x1b0] sm:$0xff]
    %v478 = vld [vmem:[#allocation5 + $0x1d0] sm:$0xff]
    %v479 = vld [vmem:[#allocation5 + $0x1f0] sm:$0xff]
    %v496 = vunpack.c.l.b16 %v464
    %v497 = vunpack.c.h.b16 %v464
    %v498 = vunpack.c.l.b16 %v465
    %v499 = vunpack.c.h.b16 %v465
    %v500 = vunpack.c.l.b16 %v466
    %v501 = vunpack.c.h.b16 %v466
    %v502 = vunpack.c.l.b16 %v467
    %v503 = vunpack.c.h.b16 %v467
    %v504 = vunpack.c.l.b16 %v468
    %v505 = vunpack.c.h.b16 %v468
    %v506 = vunpack.c.l.b16 %v469
    %v507 = vunpack.c.h.b16 %v469
    %v508 = vunpack.c.l.b16 %v470
    %v509 = vunpack.c.h.b16 %v470
    %v510 = vunpack.c.l.b16 %v471
    %v511 = vunpack.c.h.b16 %v471
    %v512 = vunpack.c.l.b16 %v472
    %v513 = vunpack.c.h.b16 %v472
    %v514 = vunpack.c.l.b16 %v473
    %v515 = vunpack.c.h.b16 %v473
    %v516 = vunpack.c.l.b16 %v474
    %v517 = vunpack.c.h.b16 %v474
    %v518 = vunpack.c.l.b16 %v475
    %v519 = vunpack.c.h.b16 %v475
    %v520 = vunpack.c.l.b16 %v476
    %v521 = vunpack.c.h.b16 %v476
    %v522 = vunpack.c.l.b16 %v477
    %v523 = vunpack.c.h.b16 %v477
    %v524 = vunpack.c.l.b16 %v478
    %v525 = vunpack.c.h.b16 %v478
    %v526 = vunpack.c.l.b16 %v479
    %v527 = vunpack.c.h.b16 %v479
    %v528 = vpack.c.b16 %v498, %v496
    %v529 = vpack.c.b16 %v499, %v497
    %v530 = vpack.c.b16 %v502, %v500
    %v531 = vpack.c.b16 %v503, %v501
    %v532 = vpack.c.b16 %v506, %v504
    %v533 = vpack.c.b16 %v507, %v505
    %v534 = vpack.c.b16 %v510, %v508
    %v535 = vpack.c.b16 %v511, %v509
    %v536 = vpack.c.b16 %v514, %v512
    %v537 = vpack.c.b16 %v515, %v513
    %v538 = vpack.c.b16 %v518, %v516
    %v539 = vpack.c.b16 %v519, %v517
    %v540 = vpack.c.b16 %v522, %v520
    %v541 = vpack.c.b16 %v523, %v521
    %v542 = vpack.c.b16 %v526, %v524
    %v543 = vpack.c.b16 %v527, %v525
    %560 = vmatpush.bf16.msra.mxu0 %v542
    %561 = vmatpush.bf16.msra.mxu0 %v540
    %562 = vmatpush.bf16.msra.mxu0 %v538
    %563 = vmatpush.bf16.msra.mxu0 %v536
    %564 = vmatpush.bf16.msra.mxu0 %v534
    %565 = vmatpush.bf16.msra.mxu0 %v532
    %566 = vmatpush.bf16.msra.mxu0 %v530
    %567 = vmatpush.bf16.msra.mxu0 %v528
    %568 = vmatmul.bf16.gmra.mxu0 %v61
    %v569 = vpop.f32.mrf.mxu0
    %v570 = vadd.f32 0.0, %v569
    %v571 = vpop.f32.mrf.mxu0
    %572 = vdwg.mxu0
    %573 = vmatpush.bf16.msra.mxu0 %v543
    %574 = vmatpush.bf16.msra.mxu0 %v541
    %575 = vmatpush.bf16.msra.mxu0 %v539
    %576 = vmatpush.bf16.msra.mxu0 %v537
    %577 = vmatpush.bf16.msra.mxu0 %v535
    %578 = vmatpush.bf16.msra.mxu0 %v533
    %579 = vmatpush.bf16.msra.mxu0 %v531
    %580 = vmatpush.bf16.msra.mxu0 %v529
    %581 = vmatmul.bf16.gmra.mxu0 %v61
    %v582 = vpop.f32.mrf.mxu0
    %v583 = vadd.f32 0.0, %v582
    %v584 = vpop.f32.mrf.mxu0
    %585 = vdwg.mxu0
    %v586 = vmul.f32 %v570, %v583
    %v587 = vpack.c.bf16 %v586, %v586
    %v588 = vld [vmem:[#allocation7 + $0x80] sm:$0xf]
    %v589 = vld [vmem:[#allocation7 + $0x84] sm:$0xf]
    %v590 = vld [vmem:[#allocation7 + $0x88] sm:$0xf]
    %v591 = vld [vmem:[#allocation7 + $0x8c] sm:$0xf]
    %v592 = vld [vmem:[#allocation7 + $0x90] sm:$0xf]
    %v593 = vld [vmem:[#allocation7 + $0x94] sm:$0xf]
    %v594 = vld [vmem:[#allocation7 + $0x98] sm:$0xf]
    %v595 = vld [vmem:[#allocation7 + $0x9c] sm:$0xf]
    %v596 = vld [vmem:[#allocation7 + $0xa0] sm:$0xf]
    %v597 = vld [vmem:[#allocation7 + $0xa4] sm:$0xf]
    %v598 = vld [vmem:[#allocation7 + $0xa8] sm:$0xf]
    %v599 = vld [vmem:[#allocation7 + $0xac] sm:$0xf]
    %v600 = vld [vmem:[#allocation7 + $0xb0] sm:$0xf]
    %v601 = vld [vmem:[#allocation7 + $0xb4] sm:$0xf]
    %v602 = vld [vmem:[#allocation7 + $0xb8] sm:$0xf]
    %v603 = vld [vmem:[#allocation7 + $0xbc] sm:$0xf]
    %v620 = vunpack.c.l.b16 %v588
    %v621 = vunpack.c.l.b16 %v589
    %v622 = vunpack.c.l.b16 %v590
    %v623 = vunpack.c.l.b16 %v591
    %v624 = vunpack.c.l.b16 %v592
    %v625 = vunpack.c.l.b16 %v593
    %v626 = vunpack.c.l.b16 %v594
    %v627 = vunpack.c.l.b16 %v595
    %v628 = vunpack.c.l.b16 %v596
    %v629 = vunpack.c.l.b16 %v597
    %v630 = vunpack.c.l.b16 %v598
    %v631 = vunpack.c.l.b16 %v599
    %v632 = vunpack.c.l.b16 %v600
    %v633 = vunpack.c.l.b16 %v601
    %v634 = vunpack.c.l.b16 %v602
    %v635 = vunpack.c.l.b16 %v603
    %v636 = vpack.c.b16 %v621, %v620
    %v637 = vpack.c.b16 %v623, %v622
    %v638 = vpack.c.b16 %v625, %v624
    %v639 = vpack.c.b16 %v627, %v626
    %v640 = vpack.c.b16 %v629, %v628
    %v641 = vpack.c.b16 %v631, %v630
    %v642 = vpack.c.b16 %v633, %v632
    %v643 = vpack.c.b16 %v635, %v634
    %652 = vmatpush.bf16.msra.mxu0 %v643
    %653 = vmatpush.bf16.msra.mxu0 %v642
    %654 = vmatpush.bf16.msra.mxu0 %v641
    %655 = vmatpush.bf16.msra.mxu0 %v640
    %656 = vmatpush.bf16.msra.mxu0 %v639
    %657 = vmatpush.bf16.msra.mxu0 %v638
    %658 = vmatpush.bf16.msra.mxu0 %v637
    %659 = vmatpush.bf16.msra.mxu0 %v636
    %660 = vmatmul.bf16.gmra.mxu0 %v587
    %v661 = vpop.f32.mrf.mxu0
    %v662 = vadd.f32 0.0, %v661
    %v663 = vpop.f32.mrf.mxu0
    %664 = vdwg.mxu0
    %v665 = vadd.f32 %v461, %v662
    %v666 = vld [vmem:[#allocation5 + $0x18] sm:$0xff]
    %v667 = vld [vmem:[#allocation5 + $0x38] sm:$0xff]
    %v668 = vld [vmem:[#allocation5 + $0x58] sm:$0xff]
    %v669 = vld [vmem:[#allocation5 + $0x78] sm:$0xff]
    %v670 = vld [vmem:[#allocation5 + $0x98] sm:$0xff]
    %v671 = vld [vmem:[#allocation5 + $0xb8] sm:$0xff]
    %v672 = vld [vmem:[#allocation5 + $0xd8] sm:$0xff]
    %v673 = vld [vmem:[#allocation5 + $0xf8] sm:$0xff]
    %v674 = vld [vmem:[#allocation5 + $0x118] sm:$0xff]
    %v675 = vld [vmem:[#allocation5 + $0x138] sm:$0xff]
    %v676 = vld [vmem:[#allocation5 + $0x158] sm:$0xff]
    %v677 = vld [vmem:[#allocation5 + $0x178] sm:$0xff]
    %v678 = vld [vmem:[#allocation5 + $0x198] sm:$0xff]
    %v679 = vld [vmem:[#allocation5 + $0x1b8] sm:$0xff]
    %v680 = vld [vmem:[#allocation5 + $0x1d8] sm:$0xff]
    %v681 = vld [vmem:[#allocation5 + $0x1f8] sm:$0xff]
    %v698 = vunpack.c.l.b16 %v666
    %v699 = vunpack.c.h.b16 %v666
    %v700 = vunpack.c.l.b16 %v667
    %v701 = vunpack.c.h.b16 %v667
    %v702 = vunpack.c.l.b16 %v668
    %v703 = vunpack.c.h.b16 %v668
    %v704 = vunpack.c.l.b16 %v669
    %v705 = vunpack.c.h.b16 %v669
    %v706 = vunpack.c.l.b16 %v670
    %v707 = vunpack.c.h.b16 %v670
    %v708 = vunpack.c.l.b16 %v671
    %v709 = vunpack.c.h.b16 %v671
    %v710 = vunpack.c.l.b16 %v672
    %v711 = vunpack.c.h.b16 %v672
    %v712 = vunpack.c.l.b16 %v673
    %v713 = vunpack.c.h.b16 %v673
    %v714 = vunpack.c.l.b16 %v674
    %v715 = vunpack.c.h.b16 %v674
    %v716 = vunpack.c.l.b16 %v675
    %v717 = vunpack.c.h.b16 %v675
    %v718 = vunpack.c.l.b16 %v676
    %v719 = vunpack.c.h.b16 %v676
    %v720 = vunpack.c.l.b16 %v677
    %v721 = vunpack.c.h.b16 %v677
    %v722 = vunpack.c.l.b16 %v678
    %v723 = vunpack.c.h.b16 %v678
    %v724 = vunpack.c.l.b16 %v679
    %v725 = vunpack.c.h.b16 %v679
    %v726 = vunpack.c.l.b16 %v680
    %v727 = vunpack.c.h.b16 %v680
    %v728 = vunpack.c.l.b16 %v681
    %v729 = vunpack.c.h.b16 %v681
    %v730 = vpack.c.b16 %v700, %v698
    %v731 = vpack.c.b16 %v701, %v699
    %v732 = vpack.c.b16 %v704, %v702
    %v733 = vpack.c.b16 %v705, %v703
    %v734 = vpack.c.b16 %v708, %v706
    %v735 = vpack.c.b16 %v709, %v707
    %v736 = vpack.c.b16 %v712, %v710
    %v737 = vpack.c.b16 %v713, %v711
    %v738 = vpack.c.b16 %v716, %v714
    %v739 = vpack.c.b16 %v717, %v715
    %v740 = vpack.c.b16 %v720, %v718
    %v741 = vpack.c.b16 %v721, %v719
    %v742 = vpack.c.b16 %v724, %v722
    %v743 = vpack.c.b16 %v725, %v723
    %v744 = vpack.c.b16 %v728, %v726
    %v745 = vpack.c.b16 %v729, %v727
    %762 = vmatpush.bf16.msra.mxu0 %v744
    %763 = vmatpush.bf16.msra.mxu0 %v742
    %764 = vmatpush.bf16.msra.mxu0 %v740
    %765 = vmatpush.bf16.msra.mxu0 %v738
    %766 = vmatpush.bf16.msra.mxu0 %v736
    %767 = vmatpush.bf16.msra.mxu0 %v734
    %768 = vmatpush.bf16.msra.mxu0 %v732
    %769 = vmatpush.bf16.msra.mxu0 %v730
    %770 = vmatmul.bf16.gmra.mxu0 %v61
    %v771 = vpop.f32.mrf.mxu0
    %v772 = vadd.f32 0.0, %v771
    %v773 = vpop.f32.mrf.mxu0
    %774 = vdwg.mxu0
    %775 = vmatpush.bf16.msra.mxu0 %v745
    %776 = vmatpush.bf16.msra.mxu0 %v743
    %777 = vmatpush.bf16.msra.mxu0 %v741
    %778 = vmatpush.bf16.msra.mxu0 %v739
    %779 = vmatpush.bf16.msra.mxu0 %v737
    %780 = vmatpush.bf16.msra.mxu0 %v735
    %781 = vmatpush.bf16.msra.mxu0 %v733
    %782 = vmatpush.bf16.msra.mxu0 %v731
    %783 = vmatmul.bf16.gmra.mxu0 %v61
    %v784 = vpop.f32.mrf.mxu0
    %v785 = vadd.f32 0.0, %v784
    %v786 = vpop.f32.mrf.mxu0
    %787 = vdwg.mxu0
    %v788 = vmul.f32 %v772, %v785
    %v789 = vpack.c.bf16 %v788, %v788
    %v790 = vld [vmem:[#allocation7 + $0xc0] sm:$0xf]
    %v791 = vld [vmem:[#allocation7 + $0xc4] sm:$0xf]
    %v792 = vld [vmem:[#allocation7 + $0xc8] sm:$0xf]
    %v793 = vld [vmem:[#allocation7 + $0xcc] sm:$0xf]
    %v794 = vld [vmem:[#allocation7 + $0xd0] sm:$0xf]
    %v795 = vld [vmem:[#allocation7 + $0xd4] sm:$0xf]
    %v796 = vld [vmem:[#allocation7 + $0xd8] sm:$0xf]
    %v797 = vld [vmem:[#allocation7 + $0xdc] sm:$0xf]
    %v798 = vld [vmem:[#allocation7 + $0xe0] sm:$0xf]
    %v799 = vld [vmem:[#allocation7 + $0xe4] sm:$0xf]
    %v800 = vld [vmem:[#allocation7 + $0xe8] sm:$0xf]
    %v801 = vld [vmem:[#allocation7 + $0xec] sm:$0xf]
    %v802 = vld [vmem:[#allocation7 + $0xf0] sm:$0xf]
    %v803 = vld [vmem:[#allocation7 + $0xf4] sm:$0xf]
    %v804 = vld [vmem:[#allocation7 + $0xf8] sm:$0xf]
    %v805 = vld [vmem:[#allocation7 + $0xfc] sm:$0xf]
    %v822 = vunpack.c.l.b16 %v790
    %v823 = vunpack.c.l.b16 %v791
    %v824 = vunpack.c.l.b16 %v792
    %v825 = vunpack.c.l.b16 %v793
    %v826 = vunpack.c.l.b16 %v794
    %v827 = vunpack.c.l.b16 %v795
    %v828 = vunpack.c.l.b16 %v796
    %v829 = vunpack.c.l.b16 %v797
    %v830 = vunpack.c.l.b16 %v798
    %v831 = vunpack.c.l.b16 %v799
    %v832 = vunpack.c.l.b16 %v800
    %v833 = vunpack.c.l.b16 %v801
    %v834 = vunpack.c.l.b16 %v802
    %v835 = vunpack.c.l.b16 %v803
    %v836 = vunpack.c.l.b16 %v804
    %v837 = vunpack.c.l.b16 %v805
    %v838 = vpack.c.b16 %v823, %v822
    %v839 = vpack.c.b16 %v825, %v824
    %v840 = vpack.c.b16 %v827, %v826
    %v841 = vpack.c.b16 %v829, %v828
    %v842 = vpack.c.b16 %v831, %v830
    %v843 = vpack.c.b16 %v833, %v832
    %v844 = vpack.c.b16 %v835, %v834
    %v845 = vpack.c.b16 %v837, %v836
    %854 = vmatpush.bf16.msra.mxu0 %v845
    %855 = vmatpush.bf16.msra.mxu0 %v844
    %856 = vmatpush.bf16.msra.mxu0 %v843
    %857 = vmatpush.bf16.msra.mxu0 %v842
    %858 = vmatpush.bf16.msra.mxu0 %v841
    %859 = vmatpush.bf16.msra.mxu0 %v840
    %860 = vmatpush.bf16.msra.mxu0 %v839
    %861 = vmatpush.bf16.msra.mxu0 %v838
    %862 = vmatmul.bf16.gmra.mxu0 %v789
    %v863 = vpop.f32.mrf.mxu0
    %v864 = vadd.f32 0.0, %v863
    %v865 = vpop.f32.mrf.mxu0
    %866 = vdwg.mxu0
    %v867 = vadd.f32 %v665, %v864
    %868 = vst [vmem:[#allocation8] sm:$0xff] %v867
    // Predicated region
    $region26: #{tpu_custom_call.1} parent=1 // pred_check
      _
    $region27: #{tpu_custom_call.1} parent=1 // pred_check_branch
      %870 = sbr.rel (0) target = $region29
    $region28: #{tpu_custom_call.1} parent=1 // pred_region
      %872 = vsyncadd [#allocation4], 0
      %s874 = sshll.u32 [#allocation8], 4
      %s875 = int_to_ptr.vmem [resolvable:$true] %s874
      %s876 = sshll.u32 %s3, 4
      %s877 = int_to_ptr.hbm [resolvable:$true] %s876
      %879 = dma.vmem_to_hbm [thread:$0]  %s875, 128, %s877, [#allocation4]
    $region29: #{tpu_custom_call.1} parent=1 // pred_fallthru
      _
    // Predicated region
    $region30: #{tpu_custom_call.1} parent=1 // pred_check
      _
    $region31: #{tpu_custom_call.1} parent=1 // pred_check_branch
      %881 = sbr.rel (0) target = $region33
    $region32: #{tpu_custom_call.1} parent=1 // pred_region
      %883 = dma.done [#allocation4], 128
    $region33: #{tpu_custom_call.1} parent=1 // pred_fallthru
      _
    %884 = vsyncpa [#allocation3], 1
    %885 = vsyncpa [#allocation6], 1
    %886 = vsyncpa [#allocation4], 1

</llo_original>
